<compile_context>
chip_gen: v7x
topology: tpu7x:2x2x1
jax: 0.10.0
libtpu: 0.0.40
codegen_flags: <defaults>
</compile_context>

<pallas_src>
import functools

import jax
import jax.numpy as jnp
from jax.experimental import pallas as pl
from jax.experimental.pallas import tpu as pltpu

# Constants that are undefined module-level names in the original file;
# small values consistent with the module's intent.
MASTER_INPUT_NUM_UNITS = 32
MASTER_HIDDEN_NUM_UNITS = 32
SLAVE_ENABLED = True  # adds +1 input feature, as in the PyTorch __init__

D_IN = MASTER_INPUT_NUM_UNITS + int(bool(SLAVE_ENABLED))   # 33
D_HID = MASTER_HIDDEN_NUM_UNITS                            # 32
D_OUT = 2

DEFAULT_TILE_B = 512   # sweep 512-2048 for large-batch deployments


def _round_up(x, m):
    return ((x + m - 1) // m) * m


def mlp_kernel(x_ref, w1_ref, b1_ref, w2_ref, b2_ref, o_ref):
    # hidden = relu(x @ W1 + b1); bf16 inputs, f32 accumulation.
    h = jnp.dot(x_ref[...], w1_ref[...], preferred_element_type=jnp.float32)
    h = jnp.maximum(h + b1_ref[...], 0.0)          # f32 VPU work
    # logits = hidden @ W2 + b2  (h kept in f32 — no silent downcast)
    out = jnp.dot(h, w2_ref[...], preferred_element_type=jnp.float32)
    o_ref[...] = (out + b2_ref[...]).astype(o_ref.dtype)


def pytorch_module_forward(features, w1, b1, w2, b2,
                           *, tile_b=DEFAULT_TILE_B, use_bf16=True):
    """features: [B, D_IN] f32, w1: [D_IN, H], b1: [1, H], w2: [H, 2], b2: [1, 2]
    -> logits [B, 2] f32. (PyTorch Linear weights must be pre-transposed.)"""
    B, d_in = features.shape
    d_hid = w1.shape[1]
    d_out = w2.shape[1]

    # --- layout plumbing (wrapper side) -----------------------------------
    # Sublane-align the contracting dim: 33 -> 40.
    d_pad = _round_up(d_in, 8)
    if d_pad != d_in:
        features = jnp.pad(features, ((0, 0), (0, d_pad - d_in)))
        w1 = jnp.pad(w1, ((0, d_pad - d_in), (0, 0)))

    # Don't blow the batch up to a huge tile when B is small.
    tile_b = min(tile_b, max(8, _round_up(B, 8)))
    b_pad = _round_up(B, tile_b)
    if b_pad != B:
        features = jnp.pad(features, ((0, b_pad - B), (0, 0)))

    # Narrow the HBM-dominant operands (first matmul inputs) to bf16.
    in_dtype = jnp.bfloat16 if use_bf16 else jnp.float32
    features = features.astype(in_dtype)
    w1 = w1.astype(in_dtype)
    b1 = b1.astype(jnp.float32)
    w2 = w2.astype(jnp.float32)
    b2 = b2.astype(jnp.float32)

    num_tiles = b_pad // tile_b
    itemsize = jnp.dtype(in_dtype).itemsize
    cost = pl.CostEstimate(
        flops=2 * b_pad * d_pad * d_hid + 2 * b_pad * d_hid * d_out,
        transcendentals=0,
        bytes_accessed=(b_pad * d_pad * itemsize          # features
                        + d_pad * d_hid * itemsize        # W1
                        + (d_hid + d_hid * d_out + d_out) * 4
                        + b_pad * d_out * 4),             # logits
    )

    out = pl.pallas_call(
        mlp_kernel,
        out_shape=jax.ShapeDtypeStruct((b_pad, d_out), jnp.float32),
        grid=(num_tiles,),
        in_specs=[
            pl.BlockSpec((tile_b, d_pad), lambda i: (i, 0)),   # features tile
            pl.BlockSpec((d_pad, d_hid), lambda i: (0, 0)),    # W1 (resident)
            pl.BlockSpec((1, d_hid), lambda i: (0, 0)),        # b1 (resident)
            pl.BlockSpec((d_hid, d_out), lambda i: (0, 0)),    # W2 (resident)
            pl.BlockSpec((1, d_out), lambda i: (0, 0)),        # b2 (resident)
        ],
        out_specs=pl.BlockSpec((tile_b, d_out), lambda i: (i, 0)),
        compiler_params=pltpu.CompilerParams(
            dimension_semantics=("parallel",)),
        cost_estimate=cost,
    )(features, w1, b1, w2, b2)

    return out[:B]


def init_params(key):
    """Deterministic init mimicking torch.nn.Linear default U(-1/sqrt(fan_in), +)."""
    k1, k2, k3, k4 = jax.random.split(key, 4)
    bound1 = 1.0 / jnp.sqrt(jnp.float32(D_IN))
    bound2 = 1.0 / jnp.sqrt(jnp.float32(D_HID))
    w1 = jax.random.uniform(k1, (D_IN, D_HID), jnp.float32, -bound1, bound1)
    b1 = jax.random.uniform(k2, (1, D_HID), jnp.float32, -bound1, bound1)
    w2 = jax.random.uniform(k3, (D_HID, D_OUT), jnp.float32, -bound2, bound2)
    b2 = jax.random.uniform(k4, (1, D_OUT), jnp.float32, -bound2, bound2)
    return w1, b1, w2, b2


if __name__ == "__main__":
    key = jax.random.PRNGKey(0)
    kx, kp = jax.random.split(key)

    # Small test shapes; B deliberately not a multiple of the tile, and a
    # small tile so the grid actually has several steps.
    B = 100
    features = jax.random.normal(kx, (B, D_IN), jnp.float32)
    w1, b1, w2, b2 = init_params(kp)

    logits = pytorch_module_forward(features, w1, b1, w2, b2, tile_b=32)
    jax.block_until_ready(logits)
    assert logits.shape == (B, D_OUT)

    # Pure-JAX reference with the same bf16 narrowing of the first matmul
    # inputs (f32 accumulation), matching the kernel's numerics.
    xb = features.astype(jnp.bfloat16).astype(jnp.float32)
    w1b = w1.astype(jnp.bfloat16).astype(jnp.float32)
    ref = jnp.maximum(xb @ w1b + b1, 0.0) @ w2 + b2
    assert jnp.allclose(logits, ref, atol=1e-3, rtol=1e-3), (
        float(jnp.max(jnp.abs(logits - ref))))

    # Also sanity-check against the full-f32 math (loose tol for bf16 inputs).
    ref_f32 = jnp.maximum(features @ w1 + b1, 0.0) @ w2 + b2
    assert jnp.allclose(logits, ref_f32, atol=3e-2, rtol=3e-2)

    # TODO(synk): loss (CrossEntropyLoss) and predict_proba (softmax) are not
    # part of forward(); forward returns raw logits, reproduced here.
    print("KERNEL_OK")
</pallas_src>

<mosaic_0001>
module attributes {stable_mosaic.version = 11 : i64} {
  func.func @mlp_kernel(%arg0: i32, %arg1: memref<32x40xbf16, #tpu.memory_space<vmem>>, %arg2: memref<40x32xbf16, #tpu.memory_space<vmem>>, %arg3: memref<1x32xf32, #tpu.memory_space<vmem>>, %arg4: memref<32x2xf32, #tpu.memory_space<vmem>>, %arg5: memref<1x2xf32, #tpu.memory_space<vmem>>, %arg6: memref<32x2xf32, #tpu.memory_space<vmem>>) attributes {dimension_semantics = [#tpu.dimension_semantics<parallel>], iteration_bounds = array<i64: 4>, scalar_prefetch = 0 : i64, scratch_operands = 0 : i64, tpu.core_type = #tpu.core_type<tc>, window_params = [{transform_indices = @transform_0, window_bounds = array<i64: 32, 40>}, {pipeline_mode = #tpu.pipeline_mode<synchronous>, transform_indices = @transform_1, window_bounds = array<i64: 40, 32>}, {pipeline_mode = #tpu.pipeline_mode<synchronous>, transform_indices = @transform_2, window_bounds = array<i64: 1, 32>}, {pipeline_mode = #tpu.pipeline_mode<synchronous>, transform_indices = @transform_3, window_bounds = array<i64: 32, 2>}, {pipeline_mode = #tpu.pipeline_mode<synchronous>, transform_indices = @transform_4, window_bounds = array<i64: 1, 2>}, {transform_indices = @transform_5, window_bounds = array<i64: 32, 2>}]} {
    %c0 = arith.constant 0 : index
    %c0_0 = arith.constant 0 : index
    %0 = vector.load %arg1[%c0, %c0_0] : memref<32x40xbf16, #tpu.memory_space<vmem>>, vector<32x40xbf16>
    %c0_1 = arith.constant 0 : index
    %c0_2 = arith.constant 0 : index
    %1 = vector.load %arg2[%c0_1, %c0_2] : memref<40x32xbf16, #tpu.memory_space<vmem>>, vector<40x32xbf16>
    %cst = arith.constant dense<0.000000e+00> : vector<32x32xf32>
    %2 = tpu.matmul %0, %1, %cst {dimension_numbers = #tpu.dot_dimension_numbers<[1], [0], [0], [1], [0, 0, 1, 1], [], []>} : vector<32x40xbf16>, vector<40x32xbf16>, vector<32x32xf32> -> vector<32x32xf32>
    %c0_3 = arith.constant 0 : index
    %c0_4 = arith.constant 0 : index
    %3 = vector.load %arg3[%c0_3, %c0_4] : memref<1x32xf32, #tpu.memory_space<vmem>>, vector<1x32xf32>
    %4 = vector.broadcast %3 : vector<1x32xf32> to vector<32x32xf32>
    %5 = arith.addf %2, %4 : vector<32x32xf32>
    %cst_5 = arith.constant 0.000000e+00 : f32
    %6 = vector.broadcast %cst_5 : f32 to vector<32x32xf32>
    %7 = arith.maximumf %5, %6 : vector<32x32xf32>
    %c0_6 = arith.constant 0 : index
    %c0_7 = arith.constant 0 : index
    %8 = vector.load %arg4[%c0_6, %c0_7] : memref<32x2xf32, #tpu.memory_space<vmem>>, vector<32x2xf32>
    %cst_8 = arith.constant dense<0.000000e+00> : vector<32x2xf32>
    %9 = tpu.matmul %7, %8, %cst_8 {dimension_numbers = #tpu.dot_dimension_numbers<[1], [0], [0], [1], [0, 0, 1, 1], [], []>} : vector<32x32xf32>, vector<32x2xf32>, vector<32x2xf32> -> vector<32x2xf32>
    %c0_9 = arith.constant 0 : index
    %c0_10 = arith.constant 0 : index
    %10 = vector.load %arg5[%c0_9, %c0_10] : memref<1x2xf32, #tpu.memory_space<vmem>>, vector<1x2xf32>
    %11 = vector.broadcast %10 : vector<1x2xf32> to vector<32x2xf32>
    %12 = arith.addf %9, %11 : vector<32x2xf32>
    %c0_11 = arith.constant 0 : index
    %c0_12 = arith.constant 0 : index
    %13 = vector.load %arg6[%c0_11, %c0_12] : memref<32x2xf32, #tpu.memory_space<vmem>>, vector<32x2xf32>
    tpu.vector_store %arg6[%c0_11, %c0_12], %12 {strides = array<i32>} : memref<32x2xf32, #tpu.memory_space<vmem>>, vector<32x2xf32>,
    return
  }
  func.func @transform_0(%arg0: i32) -> (i32, i32) {
    %c0_i32 = arith.constant 0 : i32
    %c0_i32_0 = arith.constant 0 : i32
    return %arg0, %c0_i32 : i32, i32
  }
  func.func @transform_1(%arg0: i32) -> (i32, i32) {
    %c0_i32 = arith.constant 0 : i32
    %c0_i32_0 = arith.constant 0 : i32
    %c0_i32_1 = arith.constant 0 : i32
    return %c0_i32, %c0_i32_0 : i32, i32
  }
  func.func @transform_2(%arg0: i32) -> (i32, i32) {
    %c0_i32 = arith.constant 0 : i32
    %c0_i32_0 = arith.constant 0 : i32
    %c0_i32_1 = arith.constant 0 : i32
    return %c0_i32, %c0_i32_0 : i32, i32
  }
  func.func @transform_3(%arg0: i32) -> (i32, i32) {
    %c0_i32 = arith.constant 0 : i32
    %c0_i32_0 = arith.constant 0 : i32
    %c0_i32_1 = arith.constant 0 : i32
    return %c0_i32, %c0_i32_0 : i32, i32
  }
  func.func @transform_4(%arg0: i32) -> (i32, i32) {
    %c0_i32 = arith.constant 0 : i32
    %c0_i32_0 = arith.constant 0 : i32
    %c0_i32_1 = arith.constant 0 : i32
    return %c0_i32, %c0_i32_0 : i32, i32
  }
  func.func @transform_5(%arg0: i32) -> (i32, i32) {
    %c0_i32 = arith.constant 0 : i32
    %c0_i32_0 = arith.constant 0 : i32
    return %arg0, %c0_i32 : i32, i32
  }
}

</mosaic_0001>

<llo_original>
// kernel: tpu_custom_call.1
$region0: #{tpu_custom_call.1}
  #allocation0 [shape = 'u32[]', space=smem, size = 0x4, offset = 0x4, fixed_abs, tag = 'smem constant byte address 0x4 - core index']
  #allocation1 [shape = 'u32[144,128]{1,0:T(1,128)}', space=vmem, size = 0x12000, scoped, tag = 'internal scratch']
  %s0 = inlined_call_operand.vmem [shape: bf16[128,40], index: 0, kind: input, shape index: {}]
  %s1 = inlined_call_operand.vmem [shape: bf16[40,32], index: 1, kind: input, shape index: {}]
  %s2 = inlined_call_operand.vmem [shape: f32[1,32], index: 2, kind: input, shape index: {}]
  %s3 = inlined_call_operand.vmem [shape: f32[32,2], index: 3, kind: input, shape index: {}]
  %s4 = inlined_call_operand.vmem [shape: f32[1,2], index: 4, kind: input, shape index: {}]
  %s5 = inlined_call_operand.vmem [shape: f32[128,2], index: 5, kind: output, shape index: {}]
  %s6 = sld [smem:[#allocation0]]
  $region53: #{tpu_custom_call.1} parent=0
    _
  %s8 = ssub.s32 1, %s6
  %s9 = scalar_select 0, %s8, %s6
  loop: start=0, step=1, limit=6
  $region2: #{tpu_custom_call.1} parent=0 // loop_pre_header
    _
  $region3: #{tpu_custom_call.1} parent=0 // loop_header
    %s11 = sphi 0, %s15
    %p12 = scmp.ge.s32.totalorder %s11, 6
    %s21 = sphi 0, %s23
    %s24 = sphi 0, %s21
    %s25 = sphi 0, %s24
    %s41 = sphi 0, %s25
    %s45 = sphi 0, %s45
    %s47 = sphi 0, %s45
    %s48 = sphi 0, %s47
    %s62 = sphi 0, %s48
    %s66 = sphi 0, %s66
    %s68 = sphi 0, %s66
    %s69 = sphi 0, %s68
    %s83 = sphi 0, %s69
    %s87 = sphi 0, %s87
    %s89 = sphi 0, %s87
    %s90 = sphi 0, %s89
    %s104 = sphi 0, %s90
    %s108 = sphi 0, %s108
    %s110 = sphi 0, %s108
    %s111 = sphi 0, %s110
    %s125 = sphi 0, %s111
    %s131 = sphi 0, %s133
    %s134 = sphi 0, %s131
    %s135 = sphi 0, %s134
    %s151 = sphi 0, %s135
  $region4: #{tpu_custom_call.1} parent=0 // loop_header_branch
    %14 = sbr.rel (%p12) target = $region8
  $region5: #{tpu_custom_call.1} parent=0 // loop_body
    %s16 = ssub.s32 %s11, 1
    %s17 = ssub.s32 %s11, 2
    %s18 = sadd.s32 %s11, 1
    %s19 = ssub.s32 %s11, %s18
    %p20 = scmp.eq.s32.totalorder %s19, 0
    %s22 = sadd.s32 %s21, 1
    %s23 = scalar_select %p20, %s21, %s22
    %p26 = pneg %p20
    %p27 = scmp.eq.s32.totalorder %s11, 3
    %p28 = por %p26, %p27
    %p29 = scmp.ne.s32.totalorder %s21, %s24
    %p30 = scmp.eq.s32.totalorder %s11, 0
    %p31 = por %p29, %p30
    %p32 = scmp.ne.s32.totalorder %s21, %s24
    %p33 = scmp.eq.s32.totalorder %s16, 3
    %p34 = por %p32, %p33
    %p35 = scmp.ne.s32.totalorder %s24, %s25
    %p36 = scmp.eq.s32.totalorder %s16, 0
    %p37 = por %p35, %p36
    %p38 = scmp.ne.s32.totalorder %s24, %s25
    %p39 = scmp.eq.s32.totalorder %s17, 3
    %p40 = por %p38, %p39
    %p42 = scmp.ne.s32.totalorder %s25, %s41
    %p43 = scmp.eq.s32.totalorder %s17, 0
    %p44 = por %p42, %p43
    %s46 = sadd.s32 %s45, 1
    %p49 = scmp.eq.s32.totalorder %s11, 3
    %p50 = scmp.ne.s32.totalorder %s45, %s47
    %p51 = scmp.eq.s32.totalorder %s11, 0
    %p52 = por %p50, %p51
    %p53 = scmp.ne.s32.totalorder %s45, %s47
    %p54 = scmp.eq.s32.totalorder %s16, 3
    %p55 = por %p53, %p54
    %p56 = scmp.ne.s32.totalorder %s47, %s48
    %p57 = scmp.eq.s32.totalorder %s16, 0
    %p58 = por %p56, %p57
    %p59 = scmp.ne.s32.totalorder %s47, %s48
    %p60 = scmp.eq.s32.totalorder %s17, 3
    %p61 = por %p59, %p60
    %p63 = scmp.ne.s32.totalorder %s48, %s62
    %p64 = scmp.eq.s32.totalorder %s17, 0
    %p65 = por %p63, %p64
    %s67 = sadd.s32 %s66, 1
    %p70 = scmp.eq.s32.totalorder %s11, 3
    %p71 = scmp.ne.s32.totalorder %s66, %s68
    %p72 = scmp.eq.s32.totalorder %s11, 0
    %p73 = por %p71, %p72
    %p74 = scmp.ne.s32.totalorder %s66, %s68
    %p75 = scmp.eq.s32.totalorder %s16, 3
    %p76 = por %p74, %p75
    %p77 = scmp.ne.s32.totalorder %s68, %s69
    %p78 = scmp.eq.s32.totalorder %s16, 0
    %p79 = por %p77, %p78
    %p80 = scmp.ne.s32.totalorder %s68, %s69
    %p81 = scmp.eq.s32.totalorder %s17, 3
    %p82 = por %p80, %p81
    %p84 = scmp.ne.s32.totalorder %s69, %s83
    %p85 = scmp.eq.s32.totalorder %s17, 0
    %p86 = por %p84, %p85
    %s88 = sadd.s32 %s87, 1
    %p91 = scmp.eq.s32.totalorder %s11, 3
    %p92 = scmp.ne.s32.totalorder %s87, %s89
    %p93 = scmp.eq.s32.totalorder %s11, 0
    %p94 = por %p92, %p93
    %p95 = scmp.ne.s32.totalorder %s87, %s89
    %p96 = scmp.eq.s32.totalorder %s16, 3
    %p97 = por %p95, %p96
    %p98 = scmp.ne.s32.totalorder %s89, %s90
    %p99 = scmp.eq.s32.totalorder %s16, 0
    %p100 = por %p98, %p99
    %p101 = scmp.ne.s32.totalorder %s89, %s90
    %p102 = scmp.eq.s32.totalorder %s17, 3
    %p103 = por %p101, %p102
    %p105 = scmp.ne.s32.totalorder %s90, %s104
    %p106 = scmp.eq.s32.totalorder %s17, 0
    %p107 = por %p105, %p106
    %s109 = sadd.s32 %s108, 1
    %p112 = scmp.eq.s32.totalorder %s11, 3
    %p113 = scmp.ne.s32.totalorder %s108, %s110
    %p114 = scmp.eq.s32.totalorder %s11, 0
    %p115 = por %p113, %p114
    %p116 = scmp.ne.s32.totalorder %s108, %s110
    %p117 = scmp.eq.s32.totalorder %s16, 3
    %p118 = por %p116, %p117
    %p119 = scmp.ne.s32.totalorder %s110, %s111
    %p120 = scmp.eq.s32.totalorder %s16, 0
    %p121 = por %p119, %p120
    %p122 = scmp.ne.s32.totalorder %s110, %s111
    %p123 = scmp.eq.s32.totalorder %s17, 3
    %p124 = por %p122, %p123
    %p126 = scmp.ne.s32.totalorder %s111, %s125
    %p127 = scmp.eq.s32.totalorder %s17, 0
    %p128 = por %p126, %p127
    %s129 = ssub.s32 %s11, %s18
    %p130 = scmp.eq.s32.totalorder %s129, 0
    %s132 = sadd.s32 %s131, 1
    %s133 = scalar_select %p130, %s131, %s132
    %p136 = pneg %p130
    %p137 = scmp.eq.s32.totalorder %s11, 3
    %p138 = por %p136, %p137
    %p139 = scmp.ne.s32.totalorder %s131, %s134
    %p140 = scmp.eq.s32.totalorder %s11, 0
    %p141 = por %p139, %p140
    %p142 = scmp.ne.s32.totalorder %s131, %s134
    %p143 = scmp.eq.s32.totalorder %s16, 3
    %p144 = por %p142, %p143
    %p145 = scmp.ne.s32.totalorder %s134, %s135
    %p146 = scmp.eq.s32.totalorder %s16, 0
    %p147 = por %p145, %p146
    %p148 = scmp.ne.s32.totalorder %s134, %s135
    %p149 = scmp.eq.s32.totalorder %s17, 3
    %p150 = por %p148, %p149
    %p152 = scmp.ne.s32.totalorder %s135, %s151
    %p153 = scmp.eq.s32.totalorder %s17, 0
    %p154 = por %p152, %p153
    %p155 = scmp.le.s32.totalorder 1, %s11
    %p156 = scmp.lt.s32.totalorder %s11, 5
    %p157 = pnand %p155, %p156
    %p158 = pneg %p157
    // Predicated region
    $region9: #{tpu_custom_call.1} parent=5 // pred_check
      _
    $region10: #{tpu_custom_call.1} parent=5 // pred_check_branch
      %160 = sbr.rel (%p157) target = $region12
    $region11: #{tpu_custom_call.1} parent=5 // pred_region
      %s161 = ssub.s32 %s11, 1
      // Predicated region
      $region13: #{tpu_custom_call.1} parent=11 // pred_check
        %p162 = pneg %p58
      $region14: #{tpu_custom_call.1} parent=11 // pred_check_branch
        %164 = sbr.rel (%p162) target = $region16
      $region15: #{tpu_custom_call.1} parent=11 // pred_region
        _
      $region16: #{tpu_custom_call.1} parent=11 // pred_fallthru
        _
      // Predicated region
      $region17: #{tpu_custom_call.1} parent=11 // pred_check
        %p165 = pneg %p79
      $region18: #{tpu_custom_call.1} parent=11 // pred_check_branch
        %167 = sbr.rel (%p165) target = $region20
      $region19: #{tpu_custom_call.1} parent=11 // pred_region
        _
      $region20: #{tpu_custom_call.1} parent=11 // pred_fallthru
        _
      // Predicated region
      $region21: #{tpu_custom_call.1} parent=11 // pred_check
        %p168 = pneg %p100
      $region22: #{tpu_custom_call.1} parent=11 // pred_check_branch
        %170 = sbr.rel (%p168) target = $region24
      $region23: #{tpu_custom_call.1} parent=11 // pred_region
        _
      $region24: #{tpu_custom_call.1} parent=11 // pred_fallthru
        _
      // Predicated region
      $region25: #{tpu_custom_call.1} parent=11 // pred_check
        %p171 = pneg %p121
      $region26: #{tpu_custom_call.1} parent=11 // pred_check_branch
        %173 = sbr.rel (%p171) target = $region28
      $region27: #{tpu_custom_call.1} parent=11 // pred_region
        _
      $region28: #{tpu_custom_call.1} parent=11 // pred_fallthru
        _
    $region12: #{tpu_custom_call.1} parent=5 // pred_fallthru
      _
    %p174 = scmp.lt.s32.totalorder %s11, 4
    // Predicated region
    $region29: #{tpu_custom_call.1} parent=5 // pred_check
      %p175 = pneg %p174
    $region30: #{tpu_custom_call.1} parent=5 // pred_check_branch
      %177 = sbr.rel (%p175) target = $region32
    $region31: #{tpu_custom_call.1} parent=5 // pred_region
      // Predicated region
      $region33: #{tpu_custom_call.1} parent=31 // pred_check
        %p178 = pneg %p31
      $region34: #{tpu_custom_call.1} parent=31 // pred_check_branch
        %180 = sbr.rel (%p178) target = $region36
      $region35: #{tpu_custom_call.1} parent=31 // pred_region
        %s181 = smul.u32 4, %s11
        %p182 = scmp.lt.s32.totalorder %s181, 15
        %s183 = scalar_select %p182, %s181, 15
        %s184 = smul.addr %s183, 4
        %s185 = scalar_lea.vmem %s0, %s184
        %s186 = smul.u32 4, %s11
      $region36: #{tpu_custom_call.1} parent=31 // pred_fallthru
        _
    $region32: #{tpu_custom_call.1} parent=5 // pred_fallthru
      _
    %p187 = scmp.le.s32.totalorder 1, %s11
    %p188 = scmp.lt.s32.totalorder %s11, 5
    %p189 = pnand %p187, %p188
    %p190 = pneg %p189
    // Predicated region
    $region37: #{tpu_custom_call.1} parent=5 // pred_check
      _
    $region38: #{tpu_custom_call.1} parent=5 // pred_check_branch
      %192 = sbr.rel (%p189) target = $region40
    $region39: #{tpu_custom_call.1} parent=5 // pred_region
      %s193 = ssub.s32 %s11, 1
      %s194 = smul.u32 4, %s16
      %p195 = scmp.lt.s32.totalorder %s194, 15
      %s196 = scalar_select %p195, %s194, 15
      %s197 = smul.addr %s196, 4
      %s198 = scalar_lea.vmem %s0, %s197
      %p199 = pneg %p37
      %p200 = pneg %p34
      %p201 = pneg %p58
      %p202 = pneg %p55
      %p203 = pneg %p79
      %p204 = pneg %p76
      %p205 = pneg %p100
      %p206 = pneg %p97
      %p207 = pneg %p121
      %p208 = pneg %p118
      %p209 = pneg %p147
      %p210 = pneg %p144
      %s211 = smul.u32 4, %s16
      %p212 = scmp.lt.s32.totalorder %s211, 15
      %s213 = scalar_select %p212, %s211, 15
      %s214 = smul.addr %s213, 8
      %s215 = scalar_lea.vmem %s5, %s214
      %s216 = smul.u32 4, %s16
      %p217 = scmp.lt.s32.totalorder %s216, 15
      %s218 = scalar_select %p217, %s216, 15
      %s219 = smul.addr %s218, 4
      %s220 = scalar_lea.vmem %s0, %s219
      %s221 = smul.u32 4, %s16
      %s222 = smul.u32 4, %s16
      %p223 = scmp.lt.s32.totalorder %s222, 15
      %s224 = scalar_select %p223, %s222, 15
      %s225 = smul.addr %s224, 8
      %s226 = scalar_lea.vmem %s5, %s225
      %s227 = smul.u32 4, %s16
      %v229 = vld [vmem:[%s220] sm:$0xf]
      %v230 = vld [vmem:[%s220 + $0x4] sm:$0xf]
      %v231 = vld [vmem:[%s220 + $0x8] sm:$0xf]
      %v232 = vld [vmem:[%s220 + $0xc] sm:$0xf]
      %v233 = vld [vmem:[%s1] sm:$0xf]
      %v234 = vld [vmem:[%s1 + $0x4] sm:$0xf]
      %v235 = vld [vmem:[%s1 + $0x8] sm:$0xf]
      %v236 = vld [vmem:[%s1 + $0xc] sm:$0xf]
      %v237 = vld [vmem:[%s1 + $0x10] sm:$0xf]
      %v238 = vld [vmem:[%s2] sm:$0x1]
      %v240 = vlaneseq
      %v241 = vshrl.u32 %v240, 7
      %v242 = vsub.s32 0, %v241
      %v243 = vrot.slane %v238, %v242
      %v249 = vunpack.c.l.b16 %v229
      %v250 = vunpack.c.l.b16 %v230
      %v251 = vunpack.c.l.b16 %v231
      %v252 = vunpack.c.l.b16 %v232
      %v253 = vpack.c.b16 %v250, %v249
      %v254 = vpack.c.b16 %v252, %v251
      %v260 = vunpack.c.l.b16 %v233
      %v261 = vunpack.c.l.b16 %v234
      %v262 = vunpack.c.l.b16 %v235
      %v263 = vunpack.c.l.b16 %v236
      %v264 = vunpack.c.l.b16 %v237
      %v265 = vpack.c.b16 %v261, %v260
      %v266 = vpack.c.b16 %v263, %v262
      %v267 = vpack.c.b16 %v264, %v264
      %vm270 = vcmask 326656
      %v272 = vsel %vm270, %v253, 0
      %v275 = vsel %vm270, %v254, 0
      %vm277 = vcmask 1043456
      %v279 = vsel %vm277, %v267, 0
      %281 = vmatprep.subr.bf16.mxu0 0
      %282 = vmatpush1.bf16.msra.mxu0 %v265
      %283 = vmatprep.subr.bf16.mxu0 0
      %284 = vmatpush1.bf16.msra.mxu0 %v266
      %285 = vmatprep.subr.bf16.mxu0 0
      %286 = vmatpush1.bf16.msra.mxu0 %v279
      %287 = vmatprep.subr.bf16.mxu0 0
      %288 = vmatpush1.bf16.msra.mxu0 0
      %289 = vmatprep.subr.bf16.mxu0 0
      %290 = vmatpush1.bf16.msra.mxu0 0
      %291 = vmatprep.subr.bf16.mxu0 0
      %292 = vmatpush1.bf16.msra.mxu0 0
      %293 = vmatprep.subr.bf16.mxu0 0
      %294 = vmatpush1.bf16.msra.mxu0 0
      %295 = vmatprep.subr.bf16.mxu0 0
      %296 = vmatpush1.bf16.msra.mxu0 0
      %297 = vmatprep.subr.bf16.mxu0 0
      %298 = vmatpush1.bf16.msra.mxu0 0
      %299 = vmatprep.subr.bf16.mxu0 0
      %300 = vmatpush1.bf16.msra.mxu0 0
      %301 = vmatprep.subr.bf16.mxu0 0
      %302 = vmatpush1.bf16.msra.mxu0 0
      %303 = vmatprep.subr.bf16.mxu0 0
      %304 = vmatpush1.bf16.msra.mxu0 0
      %305 = vmatprep.subr.bf16.mxu0 0
      %306 = vmatpush1.bf16.msra.mxu0 0
      %307 = vmatprep.subr.bf16.mxu0 0
      %308 = vmatpush1.bf16.msra.mxu0 0
      %309 = vmatprep.subr.bf16.mxu0 0
      %310 = vmatpush1.bf16.msra.mxu0 0
      %311 = vmatprep.subr.bf16.mxu0 0
      %312 = vmatpush1.bf16.msra.mxu0 0
      %313 = vmatprep.mubr.bf16.mxu0 0
      %314 = vmatmul.mubr.bf16.gmra.mrb[0].mxu0 %v272
      %v315 = vpop.f32.mrb[0].mxu0
      %v316 = vadd.f32 %v243, %v315
      %v317 = vpop.f32.mrb[0].mxu0
      %v318 = vpop.f32.mrb[0].mxu0
      %v319 = vadd.f32 %v243, %v318
      %v320 = vpop.f32.mrb[0].mxu0
      %321 = vmatprep.mubr.bf16.mxu0 0
      %322 = vmatmul.mubr.bf16.gmra.mrb[0].mxu0 %v275
      %v323 = vpop.f32.mrb[0].mxu0
      %v324 = vadd.f32 %v243, %v323
      %v325 = vpop.f32.mrb[0].mxu0
      %v326 = vpop.f32.mrb[0].mxu0
      %v327 = vadd.f32 %v243, %v326
      %v328 = vpop.f32.mrb[0].mxu0
      %329 = vdwg.mxu0
      %v330 = vmax.f32 %v316, 0.0
      %v331 = vmax.f32 %v319, 0.0
      %v332 = vmax.f32 %v324, 0.0
      %v333 = vmax.f32 %v327, 0.0
      %v334 = vld [vmem:[%s3] sm:$0xff]
      %v335 = vld [vmem:[%s3 + $0x8] sm:$0xff]
      %v336 = vld [vmem:[%s3 + $0x10] sm:$0xff]
      %v337 = vld [vmem:[%s3 + $0x18] sm:$0xff]
      %v338 = vld [vmem:[%s4] sm:$0x1]
      %v340 = vlaneseq
      %v341 = vshrl.u32 %v340, 7
      %v342 = vsub.s32 0, %v341
      %v343 = vrot.slane %v338, %v342
      %vm345 = vcmask 261120
      %v347 = vsel %vm345, %v330, 0
      %v350 = vsel %vm345, %v331, 0
      %v353 = vsel %vm345, %v332, 0
      %v356 = vsel %vm345, %v333, 0
      %358 = vmatprep.subr.mxu0 0.0
      %359 = vmatpush1.msra.mxu0 %v334
      %360 = vmatprep.subr.mxu0 0.0
      %361 = vmatpush1.msra.mxu0 %v335
      %362 = vmatprep.subr.mxu0 0.0
      %363 = vmatpush1.msra.mxu0 %v336
      %364 = vmatprep.subr.mxu0 0.0
      %365 = vmatpush1.msra.mxu0 %v337
      %366 = vmatprep.subr.mxu0 0.0
      %367 = vmatpush1.msra.mxu0 0.0
      %368 = vmatprep.subr.mxu0 0.0
      %369 = vmatpush1.msra.mxu0 0.0
      %370 = vmatprep.subr.mxu0 0.0
      %371 = vmatpush1.msra.mxu0 0.0
      %372 = vmatprep.subr.mxu0 0.0
      %373 = vmatpush1.msra.mxu0 0.0
      %374 = vmatprep.subr.mxu0 0.0
      %375 = vmatpush1.msra.mxu0 0.0
      %376 = vmatprep.subr.mxu0 0.0
      %377 = vmatpush1.msra.mxu0 0.0
      %378 = vmatprep.subr.mxu0 0.0
      %379 = vmatpush1.msra.mxu0 0.0
      %380 = vmatprep.subr.mxu0 0.0
      %381 = vmatpush1.msra.mxu0 0.0
      %382 = vmatprep.subr.mxu0 0.0
      %383 = vmatpush1.msra.mxu0 0.0
      %384 = vmatprep.subr.mxu0 0.0
      %385 = vmatpush1.msra.mxu0 0.0
      %386 = vmatprep.subr.mxu0 0.0
      %387 = vmatpush1.msra.mxu0 0.0
      %388 = vmatprep.subr.mxu0 0.0
      %389 = vmatpush1.msra.mxu0 0.0
      %390 = vmatprep.subr.mxu0 0.0
      %391 = vmatpush1.msra.mxu0 0.0
      %392 = vmatprep.subr.mxu0 0.0
      %393 = vmatpush1.msra.mxu0 0.0
      %394 = vmatprep.subr.mxu0 0.0
      %395 = vmatpush1.msra.mxu0 0.0
      %396 = vmatprep.subr.mxu0 0.0
      %397 = vmatpush1.msra.mxu0 0.0
      %398 = vmatprep.subr.mxu0 0.0
      %399 = vmatpush1.msra.mxu0 0.0
      %400 = vmatprep.subr.mxu0 0.0
      %401 = vmatpush1.msra.mxu0 0.0
      %402 = vmatprep.subr.mxu0 0.0
      %403 = vmatpush1.msra.mxu0 0.0
      %404 = vmatprep.subr.mxu0 0.0
      %405 = vmatpush1.msra.mxu0 0.0
      %406 = vmatprep.subr.mxu0 0.0
      %407 = vmatpush1.msra.mxu0 0.0
      %408 = vmatprep.subr.mxu0 0.0
      %409 = vmatpush1.msra.mxu0 0.0
      %410 = vmatprep.subr.mxu0 0.0
      %411 = vmatpush1.msra.mxu0 0.0
      %412 = vmatprep.subr.mxu0 0.0
      %413 = vmatpush1.msra.mxu0 0.0
      %414 = vmatprep.subr.mxu0 0.0
      %415 = vmatpush1.msra.mxu0 0.0
      %416 = vmatprep.subr.mxu0 0.0
      %417 = vmatpush1.msra.mxu0 0.0
      %418 = vmatprep.subr.mxu0 0.0
      %419 = vmatpush1.msra.mxu0 0.0
      %420 = vmatprep.subr.mxu0 0.0
      %421 = vmatpush1.msra.mxu0 0.0
      %422 = vmatprep.mubr.f32.mxu0 0.0
      %423 = vmatmul.mubr.f32.gmra.mrb[0].mxu0 %v347
      %v424 = vpop.f32.mrb[0].mxu0
      %v425 = vadd.f32 %v343, %v424
      %v426 = vpop.f32.mrb[0].mxu0
      %427 = vmatprep.mubr.f32.mxu0 0.0
      %428 = vmatmul.mubr.f32.gmra.mrb[0].mxu0 %v350
      %v429 = vpop.f32.mrb[0].mxu0
      %v430 = vadd.f32 %v343, %v429
      %v431 = vpop.f32.mrb[0].mxu0
      %432 = vmatprep.mubr.f32.mxu0 0.0
      %433 = vmatmul.mubr.f32.gmra.mrb[0].mxu0 %v353
      %v434 = vpop.f32.mrb[0].mxu0
      %v435 = vadd.f32 %v343, %v434
      %v436 = vpop.f32.mrb[0].mxu0
      %437 = vmatprep.mubr.f32.mxu0 0.0
      %438 = vmatmul.mubr.f32.gmra.mrb[0].mxu0 %v356
      %v439 = vpop.f32.mrb[0].mxu0
      %v440 = vadd.f32 %v343, %v439
      %v441 = vpop.f32.mrb[0].mxu0
      %442 = vdwg.mxu0
      %vm443 = vcmask 15360
      %444 = vst.msk [vmem:[%s226] sm:$0xff] %vm443, %v425
      %445 = vst.msk [vmem:[%s226 + $0x8] sm:$0xff] %vm443, %v430
      %446 = vst.msk [vmem:[%s226 + $0x10] sm:$0xff] %vm443, %v435
      %447 = vst.msk [vmem:[%s226 + $0x18] sm:$0xff] %vm443, %v440
      %s448 = smul.u32 4, %s16
      %p449 = scmp.lt.s32.totalorder %s448, 15
      %s450 = scalar_select %p449, %s448, 15
      %s451 = smul.addr %s450, 8
      %s452 = scalar_lea.vmem %s5, %s451
      // Predicated region
      $region41: #{tpu_custom_call.1} parent=39 // pred_check
        %p453 = pneg %p144
      $region42: #{tpu_custom_call.1} parent=39 // pred_check_branch
        %455 = sbr.rel (%p453) target = $region44
      $region43: #{tpu_custom_call.1} parent=39 // pred_region
        %s456 = smul.u32 4, %s16
      $region44: #{tpu_custom_call.1} parent=39 // pred_fallthru
        _
    $region40: #{tpu_custom_call.1} parent=5 // pred_fallthru
      _
    %p457 = scmp.le.s32.totalorder 2, %s11
    // Predicated region
    $region45: #{tpu_custom_call.1} parent=5 // pred_check
      %p458 = pneg %p457
    $region46: #{tpu_custom_call.1} parent=5 // pred_check_branch
      %460 = sbr.rel (%p458) target = $region48
    $region47: #{tpu_custom_call.1} parent=5 // pred_region
      %s461 = ssub.s32 %s11, 2
      // Predicated region
      $region49: #{tpu_custom_call.1} parent=47 // pred_check
        %p462 = pneg %p150
      $region50: #{tpu_custom_call.1} parent=47 // pred_check_branch
        %464 = sbr.rel (%p462) target = $region52
      $region51: #{tpu_custom_call.1} parent=47 // pred_region
        %s465 = smul.u32 4, %s17
        %p466 = scmp.lt.s32.totalorder %s465, 15
        %s467 = scalar_select %p466, %s465, 15
        %s468 = smul.addr %s467, 8
        %s469 = scalar_lea.vmem %s5, %s468
      $region52: #{tpu_custom_call.1} parent=47 // pred_fallthru
        _
    $region48: #{tpu_custom_call.1} parent=5 // pred_fallthru
      _
  $region6: #{tpu_custom_call.1} parent=0 // loop_footer
    %s15 = sadd.s32 1, %s11
  $region7: #{tpu_custom_call.1} parent=0 // loop_footer_branch
    %10 = sbr.rel target = $region3
  $region8: #{tpu_custom_call.1} parent=0 // loop_exit
    _

</llo_original>
